<compile_context>
chip_gen: v5e
topology: v5e:2x2
jax: 0.10.0
libtpu: 0.0.40
codegen_flags: <defaults>
</compile_context>

<pallas_src>
import functools
from typing import NamedTuple

import jax
import jax.numpy as jnp
from jax.experimental import pallas as pl
from jax.experimental.pallas import tpu as pltpu


class RayBundle(NamedTuple):
    origins: jax.Array      # (B, NR, 3)
    directions: jax.Array   # (B, NR, 3)
    lengths: jax.Array      # (B, NR, P)  -> output: (B, NR, P + n_pts_per_ray)
    xys: jax.Array          # (B, NR, 2)


def _round_up(x: int, m: int) -> int:
    return (x + m - 1) // m * m


def _prob_raysampler_kernel(tri_ref, z_ref, w_ref, out_ref, *, n_fine,
                            add_input_samples, eps):
    # Rays on the lane (last) axis; sample axes on sublanes.
    #   tri_ref: (M-1, M-1) lower-triangular ones (inclusive-cumsum operator)
    #   z_ref:   (P, TR)    coarse depths, sorted ascending along axis 0
    #   w_ref:   (P, TR)    non-negative ray weights
    #   out_ref: (L, TR)    L = P + n_fine (or n_fine if not add_input_samples)
    z = z_ref[...].astype(jnp.float32)                          # (P, TR)
    w = w_ref[...].astype(jnp.float32)                          # (P, TR)
    p, tr = z.shape
    m = p - 1
    NEG = jnp.float32(-1e30)
    POS = jnp.float32(1e30)

    # ---- sample_pdf (deterministic) -----------------------------------------
    bins = 0.5 * (z[1:, :] + z[:-1, :])                         # (M, TR)
    wi = w[1:-1, :] + eps                                       # (M-1, TR)
    pdf = wi / jnp.sum(wi, axis=0, keepdims=True)               # (M-1, TR)

    # Inclusive cumsum along the sample axis as a lane-dense MXU matmul.
    cdf_inner = jnp.dot(tri_ref[...], pdf,
                        preferred_element_type=jnp.float32)     # (M-1, TR)
    cdf = jnp.concatenate(
        [jnp.zeros((1, tr), jnp.float32), cdf_inner], axis=0)   # (M, TR)

    # Deterministic u = linspace(0, 1, n_fine); constant across rays (lanes).
    u = (jax.lax.broadcasted_iota(jnp.int32, (n_fine, tr), 0).astype(jnp.float32)
         / jnp.float32(n_fine - 1))                             # (N, TR)

    # searchsorted(cdf, u, side="right") selects the prefix {m : cdf[m] <= u}.
    le = cdf[None, :, :] <= u[:, None, :]                       # (N, M, TR)
    gt = jnp.logical_not(le)

    # cdf / bins are monotone non-decreasing along m, so the gathers reduce to
    # a prefix-max (below index) and a suffix-min (above index, clamped).
    cdf_b = jnp.max(jnp.where(le, cdf[None, :, :], NEG), axis=1)          # (N, TR)
    bin_b = jnp.max(jnp.where(le, bins[None, :, :], NEG), axis=1)         # (N, TR)
    cdf_a = jnp.minimum(jnp.min(jnp.where(gt, cdf[None, :, :], POS), axis=1),
                        cdf[m - 1, :][None, :])                           # (N, TR)
    bin_a = jnp.minimum(jnp.min(jnp.where(gt, bins[None, :, :], POS), axis=1),
                        bins[m - 1, :][None, :])                          # (N, TR)

    denom = cdf_a - cdf_b
    denom = jnp.where(denom < eps, jnp.ones_like(denom), denom)
    t = (u - cdf_b) / denom
    samples = bin_b + t * (bin_a - bin_b)                       # (N, TR)

    # ---- concat + sort -------------------------------------------------------
    if not add_input_samples:
        # samples are already non-decreasing (deterministic u, monotone CDF).
        out_ref[...] = samples.astype(out_ref.dtype)
        return

    l = p + n_fine
    # Stable 2-way merge of two already-sorted sequences (z first, samples second):
    #   rank(z[i])       = i + #{j : samples[j] <  z[i]}
    #   rank(samples[j]) = j + #{i : z[i]      <= samples[j]}
    cnt_s = jnp.sum((samples[None, :, :] < z[:, None, :]).astype(jnp.int32),
                    axis=1)                                               # (P, TR)
    rank_z = jax.lax.broadcasted_iota(jnp.int32, (p, tr), 0) + cnt_s      # (P, TR)
    cnt_z = jnp.sum((z[None, :, :] <= samples[:, None, :]).astype(jnp.int32),
                    axis=1)                                               # (N, TR)
    rank_s = jax.lax.broadcasted_iota(jnp.int32, (n_fine, tr), 0) + cnt_z # (N, TR)

    pos = jax.lax.broadcasted_iota(jnp.int32, (l, 1), 0)                  # (L, 1)
    out = jnp.sum(jnp.where(rank_z[:, None, :] == pos[None, :, :],
                            z[:, None, :], 0.0), axis=0)                  # (L, TR)
    out = out + jnp.sum(jnp.where(rank_s[:, None, :] == pos[None, :, :],
                                  samples[:, None, :], 0.0), axis=0)      # (L, TR)
    out_ref[...] = out.astype(out_ref.dtype)


def probabilistic_raysampler(ray_bundle: RayBundle, ray_weights: jax.Array,
                             n_pts_per_ray: int, *, add_input_samples: bool = True,
                             tile_rays: int = 512, eps: float = 1e-5) -> RayBundle:
    lengths = ray_bundle.lengths
    B, NR, P = lengths.shape
    assert P >= 3, "need at least 3 coarse samples per ray"
    assert n_pts_per_ray >= 2
    R = B * NR
    l_out = P + n_pts_per_ray if add_input_samples else n_pts_per_ray

    # Rays on the lane axis; tile is a multiple of 128; pad ray count to a
    # multiple of the tile (edge-replicate, stripped after the kernel).
    tile = min(_round_up(tile_rays, 128), _round_up(R, 128))
    R_pad = _round_up(R, tile)

    z = lengths.reshape(R, P).astype(jnp.float32)
    w = ray_weights.reshape(R, P).astype(jnp.float32)
    if R_pad != R:
        z = jnp.pad(z, ((0, R_pad - R), (0, 0)), mode="edge")
        w = jnp.pad(w, ((0, R_pad - R), (0, 0)), mode="edge")
    z_t = z.T                                   # (P, R_pad)
    w_t = w.T                                   # (P, R_pad)

    m1 = P - 2                                  # size of the cumsum operator (M-1)
    tri = jnp.tril(jnp.ones((m1, m1), jnp.float32))  # constant, fed once per step

    kernel = functools.partial(_prob_raysampler_kernel, n_fine=n_pts_per_ray,
                               add_input_samples=add_input_samples, eps=eps)
    out_t = pl.pallas_call(
        kernel,
        out_shape=jax.ShapeDtypeStruct((l_out, R_pad), jnp.float32),
        grid_spec=pltpu.PrefetchScalarGridSpec(
            num_scalar_prefetch=0,
            grid=(R_pad // tile,),
            in_specs=[pl.BlockSpec((m1, m1), lambda i: (0, 0)),
                      pl.BlockSpec((P, tile), lambda i: (0, i)),
                      pl.BlockSpec((P, tile), lambda i: (0, i))],
            out_specs=pl.BlockSpec((l_out, tile), lambda i: (0, i))),
        compiler_params=pltpu.CompilerParams(
            dimension_semantics=("parallel",)),
    )(tri, z_t, w_t)

    new_lengths = out_t[:, :R].T.reshape(B, NR, l_out).astype(lengths.dtype)
    return RayBundle(ray_bundle.origins, ray_bundle.directions, new_lengths,
                     ray_bundle.xys)


def _reference_new_lengths(lengths, weights, n_fine, add_input_samples=True, eps=1e-5):
    """Pure-JAX reference of the forward pass (deterministic sample_pdf)."""
    B, NR, P = lengths.shape
    z = lengths.reshape(-1, P).astype(jnp.float32)
    w = weights.reshape(-1, P).astype(jnp.float32)
    bins = 0.5 * (z[:, 1:] + z[:, :-1])
    wi = w[:, 1:-1] + eps
    pdf = wi / wi.sum(-1, keepdims=True)
    cdf = jnp.concatenate([jnp.zeros_like(pdf[:, :1]), jnp.cumsum(pdf, -1)], -1)
    u = jnp.broadcast_to(jnp.linspace(0.0, 1.0, n_fine, dtype=jnp.float32),
                         (z.shape[0], n_fine))
    inds = jax.vmap(lambda c, uu: jnp.searchsorted(c, uu, side="right"))(cdf, u)
    below = jnp.clip(inds - 1, 0, cdf.shape[-1] - 1)
    above = jnp.clip(inds, 0, cdf.shape[-1] - 1)
    cdf_b = jnp.take_along_axis(cdf, below, -1)
    cdf_a = jnp.take_along_axis(cdf, above, -1)
    bin_b = jnp.take_along_axis(bins, below, -1)
    bin_a = jnp.take_along_axis(bins, above, -1)
    denom = jnp.where(cdf_a - cdf_b < eps, 1.0, cdf_a - cdf_b)
    t = (u - cdf_b) / denom
    samples = bin_b + t * (bin_a - bin_b)
    allz = jnp.concatenate([z, samples], -1) if add_input_samples else samples
    return jnp.sort(allz, -1).reshape(B, NR, -1)


if __name__ == "__main__":
    B, NR, P = 2, 64, 8          # batch, rays-per-batch, coarse samples per ray
    N_FINE = 8                   # n_pts_per_ray (fine samples)

    key = jax.random.PRNGKey(0)
    k1, k2, k3, k4, k5 = jax.random.split(key, 5)

    base = jnp.linspace(2.0, 6.0, P, dtype=jnp.float32)
    jitter = jax.random.uniform(k1, (B, NR, P), minval=0.0, maxval=0.4,
                                dtype=jnp.float32)
    lengths = jnp.sort(base[None, None, :] + jitter, axis=-1)        # (B, NR, P)
    ray_weights = jax.random.uniform(k2, (B, NR, P), minval=0.1, maxval=1.0,
                                     dtype=jnp.float32)              # (B, NR, P)

    bundle = RayBundle(
        origins=jax.random.normal(k3, (B, NR, 3), dtype=jnp.float32),
        directions=jax.random.normal(k4, (B, NR, 3), dtype=jnp.float32),
        lengths=lengths,
        xys=jax.random.normal(k5, (B, NR, 2), dtype=jnp.float32),
    )

    out_bundle = probabilistic_raysampler(bundle, ray_weights, N_FINE,
                                          add_input_samples=True)
    new_lengths = jax.block_until_ready(out_bundle.lengths)

    ref = _reference_new_lengths(lengths, ray_weights, N_FINE, add_input_samples=True)
    assert new_lengths.shape == (B, NR, P + N_FINE)
    assert jnp.allclose(new_lengths, ref, atol=1e-4, rtol=1e-4), "mismatch vs reference"
    # pass-through fields untouched
    assert (out_bundle.origins is bundle.origins
            and out_bundle.directions is bundle.directions
            and out_bundle.xys is bundle.xys)

    print("KERNEL_OK")
</pallas_src>

<mosaic_0001>
module attributes {stable_mosaic.version = 11 : i64} {
  func.func @_prob_raysampler_kernel(%arg0: i32, %arg1: memref<6x6xf32, #tpu.memory_space<vmem>>, %arg2: memref<8x128xf32, #tpu.memory_space<vmem>>, %arg3: memref<8x128xf32, #tpu.memory_space<vmem>>, %arg4: memref<16x128xf32, #tpu.memory_space<vmem>>) attributes {dimension_semantics = [#tpu.dimension_semantics<parallel>], iteration_bounds = array<i64: 1>, scalar_prefetch = 0 : i64, scratch_operands = 0 : i64, tpu.core_type = #tpu.core_type<tc>, window_params = [{pipeline_mode = #tpu.pipeline_mode<synchronous>, transform_indices = @transform_0, window_bounds = array<i64: 6, 6>}, {transform_indices = @transform_1, window_bounds = array<i64: 8, 128>}, {transform_indices = @transform_2, window_bounds = array<i64: 8, 128>}, {transform_indices = @transform_3, window_bounds = array<i64: 16, 128>}]} {
    %c0 = arith.constant 0 : index
    %c0_0 = arith.constant 0 : index
    %0 = vector.load %arg2[%c0, %c0_0] : memref<8x128xf32, #tpu.memory_space<vmem>>, vector<8x128xf32>
    %c0_1 = arith.constant 0 : index
    %c0_2 = arith.constant 0 : index
    %1 = vector.load %arg3[%c0_1, %c0_2] : memref<8x128xf32, #tpu.memory_space<vmem>>, vector<8x128xf32>
    %2 = vector.extract_strided_slice %0 {offsets = [1, 0], sizes = [7, 128], strides = [1, 1]} : vector<8x128xf32> to vector<7x128xf32>
    %3 = vector.extract_strided_slice %0 {offsets = [0, 0], sizes = [7, 128], strides = [1, 1]} : vector<8x128xf32> to vector<7x128xf32>
    %4 = arith.addf %2, %3 : vector<7x128xf32>
    %cst = arith.constant 5.000000e-01 : f32
    %5 = vector.broadcast %cst : f32 to vector<7x128xf32>
    %6 = arith.mulf %5, %4 : vector<7x128xf32>
    %7 = vector.extract_strided_slice %1 {offsets = [1, 0], sizes = [6, 128], strides = [1, 1]} : vector<8x128xf32> to vector<6x128xf32>
    %cst_3 = arith.constant 9.99999974E-6 : f32
    %8 = vector.broadcast %cst_3 : f32 to vector<6x128xf32>
    %9 = arith.addf %7, %8 : vector<6x128xf32>
    %cst_4 = arith.constant dense<0.000000e+00> : vector<128xf32>
    %10 = vector.multi_reduction <add>, %9, %cst_4 [0] : vector<6x128xf32> to vector<128xf32>
    %11 = vector.shape_cast %10 : vector<128xf32> to vector<1x128xf32>
    %12 = vector.broadcast %11 : vector<1x128xf32> to vector<6x128xf32>
    %13 = arith.divf %9, %12 : vector<6x128xf32>
    %c0_5 = arith.constant 0 : index
    %c0_6 = arith.constant 0 : index
    %14 = vector.load %arg1[%c0_5, %c0_6] : memref<6x6xf32, #tpu.memory_space<vmem>>, vector<6x6xf32>
    %cst_7 = arith.constant dense<0.000000e+00> : vector<6x128xf32>
    %15 = tpu.matmul %14, %13, %cst_7 {dimension_numbers = #tpu.dot_dimension_numbers<[1], [0], [0], [1], [0, 0, 1, 1], [], []>} : vector<6x6xf32>, vector<6x128xf32>, vector<6x128xf32> -> vector<6x128xf32>
    %cst_8 = arith.constant 0.000000e+00 : f32
    %16 = vector.broadcast %cst_8 : f32 to vector<1x128xf32>
    %17 = tpu.concatenate %16, %15 in 0 : vector<1x128xf32>, vector<6x128xf32> -> vector<7x128xf32>
    %18 = tpu.iota {dimensions = array<i32: 0>} : vector<8x128xi32>
    %19 = arith.sitofp %18 : vector<8x128xi32> to vector<8x128xf32>
    %cst_9 = arith.constant 7.000000e+00 : f32
    %20 = vector.broadcast %cst_9 : f32 to vector<8x128xf32>
    %21 = arith.divf %19, %20 : vector<8x128xf32>
    %22 = vector.shape_cast %17 : vector<7x128xf32> to vector<1x7x128xf32>
    %23 = vector.shape_cast %21 : vector<8x128xf32> to vector<8x1x128xf32>
    %24 = vector.broadcast %22 : vector<1x7x128xf32> to vector<8x7x128xf32>
    %25 = vector.broadcast %23 : vector<8x1x128xf32> to vector<8x7x128xf32>
    %26 = arith.cmpf ole, %24, %25 : vector<8x7x128xf32>
    %cst_10 = arith.constant dense<true> : vector<8x7x128xi1>
    %27 = arith.xori %26, %cst_10 : vector<8x7x128xi1>
    %28 = vector.shape_cast %17 : vector<7x128xf32> to vector<1x7x128xf32>
    %cst_11 = arith.constant -1.000000e+30 : f32
    %29 = vector.shape_cast %28 : vector<1x7x128xf32> to vector<1x7x128xf32>
    %30 = vector.broadcast %29 : vector<1x7x128xf32> to vector<8x7x128xf32>
    %31 = vector.broadcast %cst_11 : f32 to vector<8x7x128xf32>
    %32 = arith.select %26, %30, %31 : vector<8x7x128xi1>, vector<8x7x128xf32>
    %cst_12 = arith.constant dense<0xFF800000> : vector<8x128xf32>
    %33 = vector.multi_reduction <maximumf>, %32, %cst_12 [1] : vector<8x7x128xf32> to vector<8x128xf32>
    %34 = vector.shape_cast %6 : vector<7x128xf32> to vector<1x7x128xf32>
    %cst_13 = arith.constant -1.000000e+30 : f32
    %35 = vector.shape_cast %34 : vector<1x7x128xf32> to vector<1x7x128xf32>
    %36 = vector.broadcast %35 : vector<1x7x128xf32> to vector<8x7x128xf32>
    %37 = vector.broadcast %cst_13 : f32 to vector<8x7x128xf32>
    %38 = arith.select %26, %36, %37 : vector<8x7x128xi1>, vector<8x7x128xf32>
    %cst_14 = arith.constant dense<0xFF800000> : vector<8x128xf32>
    %39 = vector.multi_reduction <maximumf>, %38, %cst_14 [1] : vector<8x7x128xf32> to vector<8x128xf32>
    %40 = vector.shape_cast %17 : vector<7x128xf32> to vector<1x7x128xf32>
    %cst_15 = arith.constant 1.000000e+30 : f32
    %41 = vector.shape_cast %40 : vector<1x7x128xf32> to vector<1x7x128xf32>
    %42 = vector.broadcast %41 : vector<1x7x128xf32> to vector<8x7x128xf32>
    %43 = vector.broadcast %cst_15 : f32 to vector<8x7x128xf32>
    %44 = arith.select %27, %42, %43 : vector<8x7x128xi1>, vector<8x7x128xf32>
    %cst_16 = arith.constant dense<0x7F800000> : vector<8x128xf32>
    %45 = vector.multi_reduction <minimumf>, %44, %cst_16 [1] : vector<8x7x128xf32> to vector<8x128xf32>
    %46 = vector.extract_strided_slice %17 {offsets = [6, 0], sizes = [1, 128], strides = [1, 1]} : vector<7x128xf32> to vector<1x128xf32>
    %47 = vector.shape_cast %46 : vector<1x128xf32> to vector<128xf32>
    %48 = vector.shape_cast %47 : vector<128xf32> to vector<1x128xf32>
    %49 = vector.broadcast %48 : vector<1x128xf32> to vector<8x128xf32>
    %50 = arith.minimumf %45, %49 : vector<8x128xf32>
    %51 = vector.shape_cast %6 : vector<7x128xf32> to vector<1x7x128xf32>
    %cst_17 = arith.constant 1.000000e+30 : f32
    %52 = vector.shape_cast %51 : vector<1x7x128xf32> to vector<1x7x128xf32>
    %53 = vector.broadcast %52 : vector<1x7x128xf32> to vector<8x7x128xf32>
    %54 = vector.broadcast %cst_17 : f32 to vector<8x7x128xf32>
    %55 = arith.select %27, %53, %54 : vector<8x7x128xi1>, vector<8x7x128xf32>
    %cst_18 = arith.constant dense<0x7F800000> : vector<8x128xf32>
    %56 = vector.multi_reduction <minimumf>, %55, %cst_18 [1] : vector<8x7x128xf32> to vector<8x128xf32>
    %57 = vector.extract_strided_slice %6 {offsets = [6, 0], sizes = [1, 128], strides = [1, 1]} : vector<7x128xf32> to vector<1x128xf32>
    %58 = vector.shape_cast %57 : vector<1x128xf32> to vector<128xf32>
    %59 = vector.shape_cast %58 : vector<128xf32> to vector<1x128xf32>
    %60 = vector.broadcast %59 : vector<1x128xf32> to vector<8x128xf32>
    %61 = arith.minimumf %56, %60 : vector<8x128xf32>
    %62 = arith.subf %50, %33 : vector<8x128xf32>
    %cst_19 = arith.constant 9.99999974E-6 : f32
    %63 = vector.broadcast %cst_19 : f32 to vector<8x128xf32>
    %64 = arith.cmpf olt, %62, %63 : vector<8x128xf32>
    %cst_20 = arith.constant 1.000000e+00 : f32
    %65 = vector.broadcast %cst_20 : f32 to vector<8x128xf32>
    %66 = arith.select %64, %65, %62 : vector<8x128xi1>, vector<8x128xf32>
    %67 = arith.subf %21, %33 : vector<8x128xf32>
    %68 = arith.divf %67, %66 : vector<8x128xf32>
    %69 = arith.subf %61, %39 : vector<8x128xf32>
    %70 = arith.mulf %68, %69 : vector<8x128xf32>
    %71 = arith.addf %39, %70 : vector<8x128xf32>
    %72 = vector.shape_cast %71 : vector<8x128xf32> to vector<1x8x128xf32>
    %73 = vector.shape_cast %0 : vector<8x128xf32> to vector<8x1x128xf32>
    %74 = vector.broadcast %72 : vector<1x8x128xf32> to vector<8x8x128xf32>
    %75 = vector.broadcast %73 : vector<8x1x128xf32> to vector<8x8x128xf32>
    %76 = arith.cmpf olt, %74, %75 : vector<8x8x128xf32>
    %77 = arith.extui %76 : vector<8x8x128xi1> to vector<8x8x128xi32>
    %cst_21 = arith.constant dense<0> : vector<8x128xi32>
    %78 = vector.multi_reduction <add>, %77, %cst_21 [1] : vector<8x8x128xi32> to vector<8x128xi32>
    %79 = tpu.iota {dimensions = array<i32: 0>} : vector<8x128xi32>
    %80 = arith.addi %79, %78 : vector<8x128xi32>
    %81 = vector.shape_cast %0 : vector<8x128xf32> to vector<1x8x128xf32>
    %82 = vector.shape_cast %71 : vector<8x128xf32> to vector<8x1x128xf32>
    %83 = vector.broadcast %81 : vector<1x8x128xf32> to vector<8x8x128xf32>
    %84 = vector.broadcast %82 : vector<8x1x128xf32> to vector<8x8x128xf32>
    %85 = arith.cmpf ole, %83, %84 : vector<8x8x128xf32>
    %86 = arith.extui %85 : vector<8x8x128xi1> to vector<8x8x128xi32>
    %cst_22 = arith.constant dense<0> : vector<8x128xi32>
    %87 = vector.multi_reduction <add>, %86, %cst_22 [1] : vector<8x8x128xi32> to vector<8x128xi32>
    %88 = tpu.iota {dimensions = array<i32: 0>} : vector<8x128xi32>
    %89 = arith.addi %88, %87 : vector<8x128xi32>
    %90 = tpu.iota {dimensions = array<i32: 0>} : vector<16x1xi32>
    %91 = vector.shape_cast %80 : vector<8x128xi32> to vector<8x1x128xi32>
    %92 = vector.shape_cast %90 : vector<16x1xi32> to vector<1x16x1xi32>
    %93 = vector.broadcast %91 : vector<8x1x128xi32> to vector<8x16x128xi32>
    %94 = vector.broadcast %92 : vector<1x16x1xi32> to vector<8x16x128xi32>
    %95 = arith.cmpi eq, %93, %94 : vector<8x16x128xi32>
    %96 = vector.shape_cast %0 : vector<8x128xf32> to vector<8x1x128xf32>
    %cst_23 = arith.constant 0.000000e+00 : f32
    %97 = vector.shape_cast %96 : vector<8x1x128xf32> to vector<8x1x128xf32>
    %98 = vector.broadcast %97 : vector<8x1x128xf32> to vector<8x16x128xf32>
    %99 = vector.broadcast %cst_23 : f32 to vector<8x16x128xf32>
    %100 = arith.select %95, %98, %99 : vector<8x16x128xi1>, vector<8x16x128xf32>
    %cst_24 = arith.constant dense<0.000000e+00> : vector<16x128xf32>
    %101 = vector.multi_reduction <add>, %100, %cst_24 [0] : vector<8x16x128xf32> to vector<16x128xf32>
    %102 = vector.shape_cast %89 : vector<8x128xi32> to vector<8x1x128xi32>
    %103 = vector.shape_cast %90 : vector<16x1xi32> to vector<1x16x1xi32>
    %104 = vector.broadcast %102 : vector<8x1x128xi32> to vector<8x16x128xi32>
    %105 = vector.broadcast %103 : vector<1x16x1xi32> to vector<8x16x128xi32>
    %106 = arith.cmpi eq, %104, %105 : vector<8x16x128xi32>
    %107 = vector.shape_cast %71 : vector<8x128xf32> to vector<8x1x128xf32>
    %cst_25 = arith.constant 0.000000e+00 : f32
    %108 = vector.shape_cast %107 : vector<8x1x128xf32> to vector<8x1x128xf32>
    %109 = vector.broadcast %108 : vector<8x1x128xf32> to vector<8x16x128xf32>
    %110 = vector.broadcast %cst_25 : f32 to vector<8x16x128xf32>
    %111 = arith.select %106, %109, %110 : vector<8x16x128xi1>, vector<8x16x128xf32>
    %cst_26 = arith.constant dense<0.000000e+00> : vector<16x128xf32>
    %112 = vector.multi_reduction <add>, %111, %cst_26 [0] : vector<8x16x128xf32> to vector<16x128xf32>
    %113 = arith.addf %101, %112 : vector<16x128xf32>
    %c0_27 = arith.constant 0 : index
    %c0_28 = arith.constant 0 : index
    %114 = vector.load %arg4[%c0_27, %c0_28] : memref<16x128xf32, #tpu.memory_space<vmem>>, vector<16x128xf32>
    tpu.vector_store %arg4[%c0_27, %c0_28], %113 {strides = array<i32>} : memref<16x128xf32, #tpu.memory_space<vmem>>, vector<16x128xf32>,
    return
  }
  func.func @transform_0(%arg0: i32) -> (i32, i32) {
    %c0_i32 = arith.constant 0 : i32
    %c0_i32_0 = arith.constant 0 : i32
    %c0_i32_1 = arith.constant 0 : i32
    return %c0_i32, %c0_i32_0 : i32, i32
  }
  func.func @transform_1(%arg0: i32) -> (i32, i32) {
    %c0_i32 = arith.constant 0 : i32
    %c0_i32_0 = arith.constant 0 : i32
    return %c0_i32, %arg0 : i32, i32
  }
  func.func @transform_2(%arg0: i32) -> (i32, i32) {
    %c0_i32 = arith.constant 0 : i32
    %c0_i32_0 = arith.constant 0 : i32
    return %c0_i32, %arg0 : i32, i32
  }
  func.func @transform_3(%arg0: i32) -> (i32, i32) {
    %c0_i32 = arith.constant 0 : i32
    %c0_i32_0 = arith.constant 0 : i32
    return %c0_i32, %arg0 : i32, i32
  }
}

</mosaic_0001>

<llo_original>
// kernel: tpu_custom_call.1
$region0: #{tpu_custom_call.1}
  #allocation0 [shape = 'u32[]', space=smem, size = 0x4, offset = 0x4, fixed_abs, tag = 'smem constant byte address 0x4 - core index']
  #allocation1 [shape = 'u32[72,128]{1,0:T(1,128)}', space=vmem, size = 0x9000, scoped, tag = 'internal scratch']
  %s0 = inlined_call_operand.hbm [shape: f32[6,6], index: 0, kind: input, shape index: {}]
  %s1 = inlined_call_operand.hbm [shape: f32[8,128], index: 1, kind: input, shape index: {}]
  %s2 = inlined_call_operand.hbm [shape: f32[8,128], index: 2, kind: input, shape index: {}]
  %s3 = inlined_call_operand.hbm [shape: f32[16,128], index: 3, kind: output, shape index: {}]
  %s4 = sld [smem:[#allocation0]]
  $region34: #{tpu_custom_call.1} parent=0
    _
  %s6 = ssub.s32 1, %s4
  %s7 = scalar_select 0, %s6, %s4
  $region1: #{tpu_custom_call.1} parent=0
    #allocation2 [shape = 'u8[4096]{0}', space=vmem, size = 0x1000, scoped, tag = 'input window, operand 0, single buffered']
    #allocation3 [shape = 's32[1]{0}', space=sflag, size = 0x4, scoped, tag = 'scoped memory for tpu_custom_call.1']
    #allocation4 [shape = 's32[1]{0}', space=sflag, size = 0x4, scoped, tag = 'scoped memory for tpu_custom_call.1']
    #allocation5 [shape = 'u8[4096]{0}', space=vmem, size = 0x1000, scoped, tag = 'input window, operand 1, single buffered']
    #allocation6 [shape = 's32[1]{0}', space=sflag, size = 0x4, scoped, tag = 'scoped memory for tpu_custom_call.1']
    #allocation7 [shape = 'u8[4096]{0}', space=vmem, size = 0x1000, scoped, tag = 'input window, operand 2, single buffered']
    #allocation8 [shape = 'u8[8192]{0}', space=vmem, size = 0x2000, scoped, tag = 'output window, operand 0, single buffered']
    %8 = vsyncpa [#allocation3], 0
    %9 = vsyncpa [#allocation6], 0
    %10 = vsyncpa [#allocation4], 0
    // Predicated region
    $region2: #{tpu_custom_call.1} parent=1 // pred_check
      _
    $region3: #{tpu_custom_call.1} parent=1 // pred_check_branch
      %12 = sbr.rel (0) target = $region5
    $region4: #{tpu_custom_call.1} parent=1 // pred_region
      %14 = vsyncadd [#allocation3], 0
      %s16 = sshll.u32 %s0, 4
      %s17 = int_to_ptr.hbm [resolvable:$true] %s16
      %s18 = sshll.u32 [#allocation2], 4
      %s19 = int_to_ptr.vmem [resolvable:$true] %s18
      %21 = dma.hbm_to_vmem [thread:$0]  %s17, 128, %s19, [#allocation3]
    $region5: #{tpu_custom_call.1} parent=1 // pred_fallthru
      _
    // Predicated region
    $region6: #{tpu_custom_call.1} parent=1 // pred_check
      _
    $region7: #{tpu_custom_call.1} parent=1 // pred_check_branch
      %23 = sbr.rel (0) target = $region9
    $region8: #{tpu_custom_call.1} parent=1 // pred_region
      %25 = vsyncadd [#allocation6], 0
      %s27 = sshll.u32 %s1, 4
      %s28 = int_to_ptr.hbm [resolvable:$true] %s27
      %s29 = sshll.u32 [#allocation5], 4
      %s30 = int_to_ptr.vmem [resolvable:$true] %s29
      %32 = dma.hbm_to_vmem [thread:$0]  %s28, 128, %s30, [#allocation6]
    $region9: #{tpu_custom_call.1} parent=1 // pred_fallthru
      _
    // Predicated region
    $region10: #{tpu_custom_call.1} parent=1 // pred_check
      _
    $region11: #{tpu_custom_call.1} parent=1 // pred_check_branch
      %34 = sbr.rel (0) target = $region13
    $region12: #{tpu_custom_call.1} parent=1 // pred_region
      %36 = vsyncadd [#allocation6], 0
      %s38 = sshll.u32 %s2, 4
      %s39 = int_to_ptr.hbm [resolvable:$true] %s38
      %s40 = sshll.u32 [#allocation7], 4
      %s41 = int_to_ptr.vmem [resolvable:$true] %s40
      %43 = dma.hbm_to_vmem [thread:$0]  %s39, 128, %s41, [#allocation6]
    $region13: #{tpu_custom_call.1} parent=1 // pred_fallthru
      _
    // Predicated region
    $region14: #{tpu_custom_call.1} parent=1 // pred_check
      _
    $region15: #{tpu_custom_call.1} parent=1 // pred_check_branch
      %45 = sbr.rel (0) target = $region17
    $region16: #{tpu_custom_call.1} parent=1 // pred_region
      %47 = dma.done [#allocation3], 128
    $region17: #{tpu_custom_call.1} parent=1 // pred_fallthru
      _
    // Predicated region
    $region18: #{tpu_custom_call.1} parent=1 // pred_check
      _
    $region19: #{tpu_custom_call.1} parent=1 // pred_check_branch
      %49 = sbr.rel (0) target = $region21
    $region20: #{tpu_custom_call.1} parent=1 // pred_region
      %51 = dma.done [#allocation6], 128
    $region21: #{tpu_custom_call.1} parent=1 // pred_fallthru
      _
    // Predicated region
    $region22: #{tpu_custom_call.1} parent=1 // pred_check
      _
    $region23: #{tpu_custom_call.1} parent=1 // pred_check_branch
      %53 = sbr.rel (0) target = $region25
    $region24: #{tpu_custom_call.1} parent=1 // pred_region
      %55 = dma.done [#allocation6], 128
    $region25: #{tpu_custom_call.1} parent=1 // pred_fallthru
      _
    %v56 = vld [vmem:[#allocation5] sm:$0xff]
    %v57 = vld [vmem:[#allocation7] sm:$0xff]
    %v59 = vrot.slane %v56, 7
    %v61 = vadd.f32 %v56, %v59
    %v62 = vmul.f32 %v61, 0.5
    %v63 = vadd.f32 %v57, 1e-05
    %v65 = vrot.slane %v63, 1
    %vm67 = vcmask 1045504
    %v68 = vsel %vm67, %v65, 0.0
    %v69 = vrot.slane %v68, 4
    %v70 = vadd.f32 %v68, %v69
    %v71 = vrot.slane %v70, 2
    %v72 = vadd.f32 %v70, %v71
    %v73 = vrot.slane %v72, 1
    %v74 = vadd.f32 %v72, %v73
    %v75 = vrcp.pop %v74
    %v76 = vmul.f32 %v74, %v75
    %v77 = vsub.f32 1.0, %v76
    %v78 = vmul.f32 %v75, %v77
    %v79 = vadd.f32 %v75, %v78
    %vm80 = vweird.f32 %v74
    %vm81 = vweird.f32 %v75
    %vm82 = vmor %vm80, %vm81
    %v83 = vsel %vm82, %v75, %v79
    %v84 = vand.u32 2147483647, %v74
    %vm85 = vcmp.eq.f32.partialorder %v84, 8.507059e+37
    %v86 = vand.u32 %v74, 2147483648
    %v87 = vor.u32 1.1754944e-38, %v86
    %v88 = vsel %vm85, %v87, %v83
    %v89 = vmul.f32 %v63, %v88
    %v90 = vld [vmem:[#allocation2] sm:$0x3f]
    %v92 = vrot.slane %v89, 1
    %vm93 = vcmask 48128
    %v95 = vsel %vm93, %v90, 0
    %v97 = vsel %vm67, %v92, 0
    %99 = vmatpush.msra.mxu0 0.0
    %100 = vmatpush.msra.mxu0 0.0
    %101 = vmatpush.msra.mxu0 0.0
    %102 = vmatpush.msra.mxu0 0.0
    %103 = vmatpush.msra.mxu0 0.0
    %104 = vmatpush.msra.mxu0 0.0
    %105 = vmatpush.msra.mxu0 0.0
    %106 = vmatpush.msra.mxu0 0.0
    %107 = vmatpush.msra.mxu0 0.0
    %108 = vmatpush.msra.mxu0 0.0
    %109 = vmatpush.msra.mxu0 0.0
    %110 = vmatpush.msra.mxu0 0.0
    %111 = vmatpush.msra.mxu0 0.0
    %112 = vmatpush.msra.mxu0 0.0
    %113 = vmatpush.msra.mxu0 0.0
    %114 = vmatpush.msra.mxu0 %v97
    %115 = vmatmul.f32.gmra.mxu0 %v95
    %v116 = vpop.f32.mrf.mxu0
    %v117 = vadd.f32 0.0, %v116
    %118 = vdwg.mxu0
    %v120 = vrot.slane %v117, 7
    %vm122 = vcmask 1040384
    %v123 = vsel %vm122, 0.0, %v120
    %v124 = vlaneseq
    %v125 = vshrl.u32 %v124, 7
    %v126 = vcvt.s32.f32 %v125
    %v127 = vrcp.pop 7.0
    %v128 = vmul.f32 7.0, %v127
    %v129 = vsub.f32 1.0, %v128
    %v130 = vmul.f32 %v127, %v129
    %v131 = vadd.f32 %v127, %v130
    %vm132 = vweird.f32 %v127
    %v133 = vsel %vm132, %v127, %v131
    %v134 = vmul.f32 %v126, %v133
    %v136 = vperm.slane %v134, 0
    %v137 = vperm.slane %v134, 1
    %v138 = vperm.slane %v134, 2
    %v139 = vperm.slane %v134, 3
    %v140 = vperm.slane %v134, 4
    %v141 = vperm.slane %v134, 5
    %v142 = vperm.slane %v134, 6
    %v143 = vperm.slane %v134, 7
    %vm152 = vcmp.le.f32.partialorder %v123, %v136
    %vm153 = vcmp.le.f32.partialorder %v123, %v137
    %vm154 = vcmp.le.f32.partialorder %v123, %v138
    %vm155 = vcmp.le.f32.partialorder %v123, %v139
    %vm156 = vcmp.le.f32.partialorder %v123, %v140
    %vm157 = vcmp.le.f32.partialorder %v123, %v141
    %vm158 = vcmp.le.f32.partialorder %v123, %v142
    %vm159 = vcmp.le.f32.partialorder %v123, %v143
    %vm160 = vmxor %vm152, 1
    %vm161 = vmxor %vm153, 1
    %vm162 = vmxor %vm154, 1
    %vm163 = vmxor %vm155, 1
    %vm164 = vmxor %vm156, 1
    %vm165 = vmxor %vm157, 1
    %vm166 = vmxor %vm158, 1
    %vm167 = vmxor %vm159, 1
    %v168 = vsel %vm152, %v123, -1e+30
    %v169 = vsel %vm153, %v123, -1e+30
    %v170 = vsel %vm154, %v123, -1e+30
    %v171 = vsel %vm155, %v123, -1e+30
    %v172 = vsel %vm156, %v123, -1e+30
    %v173 = vsel %vm157, %v123, -1e+30
    %v174 = vsel %vm158, %v123, -1e+30
    %v175 = vsel %vm159, %v123, -1e+30
    %vm176 = vcmask 1046528
    %v177 = vsel %vm176, %v168, -inf
    %v178 = vrot.slane %v177, 4
    %v179 = vmax.f32 %v177, %v178
    %v180 = vrot.slane %v179, 2
    %v181 = vmax.f32 %v179, %v180
    %v182 = vrot.slane %v181, 1
    %v183 = vmax.f32 %v181, %v182
    %v184 = vsel %vm176, %v169, -inf
    %v185 = vrot.slane %v184, 4
    %v186 = vmax.f32 %v184, %v185
    %v187 = vrot.slane %v186, 2
    %v188 = vmax.f32 %v186, %v187
    %v189 = vrot.slane %v188, 1
    %v190 = vmax.f32 %v188, %v189
    %v191 = vsel %vm176, %v170, -inf
    %v192 = vrot.slane %v191, 4
    %v193 = vmax.f32 %v191, %v192
    %v194 = vrot.slane %v193, 2
    %v195 = vmax.f32 %v193, %v194
    %v196 = vrot.slane %v195, 1
    %v197 = vmax.f32 %v195, %v196
    %v198 = vsel %vm176, %v171, -inf
    %v199 = vrot.slane %v198, 4
    %v200 = vmax.f32 %v198, %v199
    %v201 = vrot.slane %v200, 2
    %v202 = vmax.f32 %v200, %v201
    %v203 = vrot.slane %v202, 1
    %v204 = vmax.f32 %v202, %v203
    %v205 = vsel %vm176, %v172, -inf
    %v206 = vrot.slane %v205, 4
    %v207 = vmax.f32 %v205, %v206
    %v208 = vrot.slane %v207, 2
    %v209 = vmax.f32 %v207, %v208
    %v210 = vrot.slane %v209, 1
    %v211 = vmax.f32 %v209, %v210
    %v212 = vsel %vm176, %v173, -inf
    %v213 = vrot.slane %v212, 4
    %v214 = vmax.f32 %v212, %v213
    %v215 = vrot.slane %v214, 2
    %v216 = vmax.f32 %v214, %v215
    %v217 = vrot.slane %v216, 1
    %v218 = vmax.f32 %v216, %v217
    %v219 = vsel %vm176, %v174, -inf
    %v220 = vrot.slane %v219, 4
    %v221 = vmax.f32 %v219, %v220
    %v222 = vrot.slane %v221, 2
    %v223 = vmax.f32 %v221, %v222
    %v224 = vrot.slane %v223, 1
    %v225 = vmax.f32 %v223, %v224
    %v226 = vsel %vm176, %v175, -inf
    %v227 = vrot.slane %v226, 4
    %v228 = vmax.f32 %v226, %v227
    %v229 = vrot.slane %v228, 2
    %v230 = vmax.f32 %v228, %v229
    %v231 = vrot.slane %v230, 1
    %v232 = vmax.f32 %v230, %v231
    %v234 = vrot.slane %v62, 1
    %v236 = vsel %vm152, %v234, -1e+30
    %v237 = vsel %vm153, %v234, -1e+30
    %v238 = vsel %vm154, %v234, -1e+30
    %v239 = vsel %vm155, %v234, -1e+30
    %v240 = vsel %vm156, %v234, -1e+30
    %v241 = vsel %vm157, %v234, -1e+30
    %v242 = vsel %vm158, %v234, -1e+30
    %v243 = vsel %vm159, %v234, -1e+30
    %v244 = vsel %vm176, %v236, -inf
    %v245 = vrot.slane %v244, 4
    %v246 = vmax.f32 %v244, %v245
    %v247 = vrot.slane %v246, 2
    %v248 = vmax.f32 %v246, %v247
    %v249 = vrot.slane %v248, 1
    %v250 = vmax.f32 %v248, %v249
    %v251 = vsel %vm176, %v237, -inf
    %v252 = vrot.slane %v251, 4
    %v253 = vmax.f32 %v251, %v252
    %v254 = vrot.slane %v253, 2
    %v255 = vmax.f32 %v253, %v254
    %v256 = vrot.slane %v255, 1
    %v257 = vmax.f32 %v255, %v256
    %v258 = vsel %vm176, %v238, -inf
    %v259 = vrot.slane %v258, 4
    %v260 = vmax.f32 %v258, %v259
    %v261 = vrot.slane %v260, 2
    %v262 = vmax.f32 %v260, %v261
    %v263 = vrot.slane %v262, 1
    %v264 = vmax.f32 %v262, %v263
    %v265 = vsel %vm176, %v239, -inf
    %v266 = vrot.slane %v265, 4
    %v267 = vmax.f32 %v265, %v266
    %v268 = vrot.slane %v267, 2
    %v269 = vmax.f32 %v267, %v268
    %v270 = vrot.slane %v269, 1
    %v271 = vmax.f32 %v269, %v270
    %v272 = vsel %vm176, %v240, -inf
    %v273 = vrot.slane %v272, 4
    %v274 = vmax.f32 %v272, %v273
    %v275 = vrot.slane %v274, 2
    %v276 = vmax.f32 %v274, %v275
    %v277 = vrot.slane %v276, 1
    %v278 = vmax.f32 %v276, %v277
    %v279 = vsel %vm176, %v241, -inf
    %v280 = vrot.slane %v279, 4
    %v281 = vmax.f32 %v279, %v280
    %v282 = vrot.slane %v281, 2
    %v283 = vmax.f32 %v281, %v282
    %v284 = vrot.slane %v283, 1
    %v285 = vmax.f32 %v283, %v284
    %v286 = vsel %vm176, %v242, -inf
    %v287 = vrot.slane %v286, 4
    %v288 = vmax.f32 %v286, %v287
    %v289 = vrot.slane %v288, 2
    %v290 = vmax.f32 %v288, %v289
    %v291 = vrot.slane %v290, 1
    %v292 = vmax.f32 %v290, %v291
    %v293 = vsel %vm176, %v243, -inf
    %v294 = vrot.slane %v293, 4
    %v295 = vmax.f32 %v293, %v294
    %v296 = vrot.slane %v295, 2
    %v297 = vmax.f32 %v295, %v296
    %v298 = vrot.slane %v297, 1
    %v299 = vmax.f32 %v297, %v298
    %v300 = vsel %vm160, %v123, 1e+30
    %v301 = vsel %vm161, %v123, 1e+30
    %v302 = vsel %vm162, %v123, 1e+30
    %v303 = vsel %vm163, %v123, 1e+30
    %v304 = vsel %vm164, %v123, 1e+30
    %v305 = vsel %vm165, %v123, 1e+30
    %v306 = vsel %vm166, %v123, 1e+30
    %v307 = vsel %vm167, %v123, 1e+30
    %v308 = vsel %vm176, %v300, inf
    %v309 = vrot.slane %v308, 4
    %v310 = vmin.f32 %v308, %v309
    %v311 = vrot.slane %v310, 2
    %v312 = vmin.f32 %v310, %v311
    %v313 = vrot.slane %v312, 1
    %v314 = vmin.f32 %v312, %v313
    %v315 = vsel %vm176, %v301, inf
    %v316 = vrot.slane %v315, 4
    %v317 = vmin.f32 %v315, %v316
    %v318 = vrot.slane %v317, 2
    %v319 = vmin.f32 %v317, %v318
    %v320 = vrot.slane %v319, 1
    %v321 = vmin.f32 %v319, %v320
    %v322 = vsel %vm176, %v302, inf
    %v323 = vrot.slane %v322, 4
    %v324 = vmin.f32 %v322, %v323
    %v325 = vrot.slane %v324, 2
    %v326 = vmin.f32 %v324, %v325
    %v327 = vrot.slane %v326, 1
    %v328 = vmin.f32 %v326, %v327
    %v329 = vsel %vm176, %v303, inf
    %v330 = vrot.slane %v329, 4
    %v331 = vmin.f32 %v329, %v330
    %v332 = vrot.slane %v331, 2
    %v333 = vmin.f32 %v331, %v332
    %v334 = vrot.slane %v333, 1
    %v335 = vmin.f32 %v333, %v334
    %v336 = vsel %vm176, %v304, inf
    %v337 = vrot.slane %v336, 4
    %v338 = vmin.f32 %v336, %v337
    %v339 = vrot.slane %v338, 2
    %v340 = vmin.f32 %v338, %v339
    %v341 = vrot.slane %v340, 1
    %v342 = vmin.f32 %v340, %v341
    %v343 = vsel %vm176, %v305, inf
    %v344 = vrot.slane %v343, 4
    %v345 = vmin.f32 %v343, %v344
    %v346 = vrot.slane %v345, 2
    %v347 = vmin.f32 %v345, %v346
    %v348 = vrot.slane %v347, 1
    %v349 = vmin.f32 %v347, %v348
    %v350 = vsel %vm176, %v306, inf
    %v351 = vrot.slane %v350, 4
    %v352 = vmin.f32 %v350, %v351
    %v353 = vrot.slane %v352, 2
    %v354 = vmin.f32 %v352, %v353
    %v355 = vrot.slane %v354, 1
    %v356 = vmin.f32 %v354, %v355
    %v357 = vsel %vm176, %v307, inf
    %v358 = vrot.slane %v357, 4
    %v359 = vmin.f32 %v357, %v358
    %v360 = vrot.slane %v359, 2
    %v361 = vmin.f32 %v359, %v360
    %v362 = vrot.slane %v361, 1
    %v363 = vmin.f32 %v361, %v362
    %v364 = vperm.slane %v123, 6
    %v365 = vmin.f32 %v314, %v364
    %v366 = vmin.f32 %v321, %v364
    %v367 = vmin.f32 %v328, %v364
    %v368 = vmin.f32 %v335, %v364
    %v369 = vmin.f32 %v342, %v364
    %v370 = vmin.f32 %v349, %v364
    %v371 = vmin.f32 %v356, %v364
    %v372 = vmin.f32 %v363, %v364
    %v373 = vsel %vm160, %v234, 1e+30
    %v374 = vsel %vm161, %v234, 1e+30
    %v375 = vsel %vm162, %v234, 1e+30
    %v376 = vsel %vm163, %v234, 1e+30
    %v377 = vsel %vm164, %v234, 1e+30
    %v378 = vsel %vm165, %v234, 1e+30
    %v379 = vsel %vm166, %v234, 1e+30
    %v380 = vsel %vm167, %v234, 1e+30
    %v381 = vsel %vm176, %v373, inf
    %v382 = vrot.slane %v381, 4
    %v383 = vmin.f32 %v381, %v382
    %v384 = vrot.slane %v383, 2
    %v385 = vmin.f32 %v383, %v384
    %v386 = vrot.slane %v385, 1
    %v387 = vmin.f32 %v385, %v386
    %v388 = vsel %vm176, %v374, inf
    %v389 = vrot.slane %v388, 4
    %v390 = vmin.f32 %v388, %v389
    %v391 = vrot.slane %v390, 2
    %v392 = vmin.f32 %v390, %v391
    %v393 = vrot.slane %v392, 1
    %v394 = vmin.f32 %v392, %v393
    %v395 = vsel %vm176, %v375, inf
    %v396 = vrot.slane %v395, 4
    %v397 = vmin.f32 %v395, %v396
    %v398 = vrot.slane %v397, 2
    %v399 = vmin.f32 %v397, %v398
    %v400 = vrot.slane %v399, 1
    %v401 = vmin.f32 %v399, %v400
    %v402 = vsel %vm176, %v376, inf
    %v403 = vrot.slane %v402, 4
    %v404 = vmin.f32 %v402, %v403
    %v405 = vrot.slane %v404, 2
    %v406 = vmin.f32 %v404, %v405
    %v407 = vrot.slane %v406, 1
    %v408 = vmin.f32 %v406, %v407
    %v409 = vsel %vm176, %v377, inf
    %v410 = vrot.slane %v409, 4
    %v411 = vmin.f32 %v409, %v410
    %v412 = vrot.slane %v411, 2
    %v413 = vmin.f32 %v411, %v412
    %v414 = vrot.slane %v413, 1
    %v415 = vmin.f32 %v413, %v414
    %v416 = vsel %vm176, %v378, inf
    %v417 = vrot.slane %v416, 4
    %v418 = vmin.f32 %v416, %v417
    %v419 = vrot.slane %v418, 2
    %v420 = vmin.f32 %v418, %v419
    %v421 = vrot.slane %v420, 1
    %v422 = vmin.f32 %v420, %v421
    %v423 = vsel %vm176, %v379, inf
    %v424 = vrot.slane %v423, 4
    %v425 = vmin.f32 %v423, %v424
    %v426 = vrot.slane %v425, 2
    %v427 = vmin.f32 %v425, %v426
    %v428 = vrot.slane %v427, 1
    %v429 = vmin.f32 %v427, %v428
    %v430 = vsel %vm176, %v380, inf
    %v431 = vrot.slane %v430, 4
    %v432 = vmin.f32 %v430, %v431
    %v433 = vrot.slane %v432, 2
    %v434 = vmin.f32 %v432, %v433
    %v435 = vrot.slane %v434, 1
    %v436 = vmin.f32 %v434, %v435
    %v437 = vperm.slane %v62, 7
    %v438 = vmin.f32 %v387, %v437
    %v439 = vmin.f32 %v394, %v437
    %v440 = vmin.f32 %v401, %v437
    %v441 = vmin.f32 %v408, %v437
    %v442 = vmin.f32 %v415, %v437
    %v443 = vmin.f32 %v422, %v437
    %v444 = vmin.f32 %v429, %v437
    %v445 = vmin.f32 %v436, %v437
    %v446 = vsub.f32 %v365, %v183
    %v447 = vsub.f32 %v366, %v190
    %v448 = vsub.f32 %v367, %v197
    %v449 = vsub.f32 %v368, %v204
    %v450 = vsub.f32 %v369, %v211
    %v451 = vsub.f32 %v370, %v218
    %v452 = vsub.f32 %v371, %v225
    %v453 = vsub.f32 %v372, %v232
    %vm454 = vcmp.lt.f32.partialorder %v446, 1e-05
    %vm455 = vcmp.lt.f32.partialorder %v447, 1e-05
    %vm456 = vcmp.lt.f32.partialorder %v448, 1e-05
    %vm457 = vcmp.lt.f32.partialorder %v449, 1e-05
    %vm458 = vcmp.lt.f32.partialorder %v450, 1e-05
    %vm459 = vcmp.lt.f32.partialorder %v451, 1e-05
    %vm460 = vcmp.lt.f32.partialorder %v452, 1e-05
    %vm461 = vcmp.lt.f32.partialorder %v453, 1e-05
    %v462 = vsel %vm454, 1.0, %v446
    %v463 = vsel %vm455, 1.0, %v447
    %v464 = vsel %vm456, 1.0, %v448
    %v465 = vsel %vm457, 1.0, %v449
    %v466 = vsel %vm458, 1.0, %v450
    %v467 = vsel %vm459, 1.0, %v451
    %v468 = vsel %vm460, 1.0, %v452
    %v469 = vsel %vm461, 1.0, %v453
    %vm478 = vcmask 1041409
    %v479 = vsel %vm478, %v190, %v183
    %vm480 = vcmask 1042434
    %v481 = vsel %vm480, %v197, %v479
    %vm482 = vcmask 1043459
    %v483 = vsel %vm482, %v204, %v481
    %vm484 = vcmask 1044484
    %v485 = vsel %vm484, %v211, %v483
    %vm486 = vcmask 1045509
    %v487 = vsel %vm486, %v218, %v485
    %vm488 = vcmask 1046534
    %v489 = vsel %vm488, %v225, %v487
    %vm490 = vcmask 1047559
    %v491 = vsel %vm490, %v232, %v489
    %v493 = vsub.f32 %v134, %v491
    %v502 = vrot.slane %v463, 7
    %v503 = vsel %vm478, %v502, %v462
    %v504 = vrot.slane %v464, 6
    %v505 = vsel %vm480, %v504, %v503
    %v506 = vrot.slane %v465, 5
    %v507 = vsel %vm482, %v506, %v505
    %v508 = vrot.slane %v466, 4
    %v509 = vsel %vm484, %v508, %v507
    %v510 = vrot.slane %v467, 3
    %v511 = vsel %vm486, %v510, %v509
    %v512 = vrot.slane %v468, 2
    %v513 = vsel %vm488, %v512, %v511
    %v514 = vrot.slane %v469, 1
    %v515 = vsel %vm490, %v514, %v513
    %v517 = vrcp.pop %v515
    %v518 = vmul.f32 %v515, %v517
    %v519 = vsub.f32 1.0, %v518
    %v520 = vmul.f32 %v517, %v519
    %v521 = vadd.f32 %v517, %v520
    %vm522 = vweird.f32 %v515
    %vm523 = vweird.f32 %v517
    %vm524 = vmor %vm522, %vm523
    %v525 = vsel %vm524, %v517, %v521
    %v526 = vand.u32 2147483647, %v515
    %vm527 = vcmp.eq.f32.partialorder %v526, 8.507059e+37
    %v528 = vand.u32 %v515, 2147483648
    %v529 = vor.u32 1.1754944e-38, %v528
    %v530 = vsel %vm527, %v529, %v525
    %v531 = vmul.f32 %v493, %v530
    %v532 = vsub.f32 %v438, %v250
    %v533 = vsub.f32 %v439, %v257
    %v534 = vsub.f32 %v440, %v264
    %v535 = vsub.f32 %v441, %v271
    %v536 = vsub.f32 %v442, %v278
    %v537 = vsub.f32 %v443, %v285
    %v538 = vsub.f32 %v444, %v292
    %v539 = vsub.f32 %v445, %v299
    %v548 = vrot.slane %v533, 7
    %v549 = vsel %vm478, %v548, %v532
    %v550 = vrot.slane %v534, 6
    %v551 = vsel %vm480, %v550, %v549
    %v552 = vrot.slane %v535, 5
    %v553 = vsel %vm482, %v552, %v551
    %v554 = vrot.slane %v536, 4
    %v555 = vsel %vm484, %v554, %v553
    %v556 = vrot.slane %v537, 3
    %v557 = vsel %vm486, %v556, %v555
    %v558 = vrot.slane %v538, 2
    %v559 = vsel %vm488, %v558, %v557
    %v560 = vrot.slane %v539, 1
    %v561 = vsel %vm490, %v560, %v559
    %v563 = vmul.f32 %v531, %v561
    %v565 = vrot.slane %v563, 1
    %v566 = vrot.slane %v563, 2
    %v567 = vrot.slane %v563, 3
    %v568 = vrot.slane %v563, 4
    %v569 = vrot.slane %v563, 5
    %v570 = vrot.slane %v563, 6
    %v571 = vrot.slane %v563, 7
    %v580 = vadd.f32 %v250, %v563
    %v581 = vadd.f32 %v257, %v565
    %v582 = vadd.f32 %v264, %v566
    %v583 = vadd.f32 %v271, %v567
    %v584 = vadd.f32 %v278, %v568
    %v585 = vadd.f32 %v285, %v569
    %v586 = vadd.f32 %v292, %v570
    %v587 = vadd.f32 %v299, %v571
    %v588 = vrot.slane %v56, 1
    %v589 = vrot.slane %v56, 2
    %v590 = vrot.slane %v56, 3
    %v591 = vrot.slane %v56, 4
    %v592 = vrot.slane %v56, 5
    %v593 = vrot.slane %v56, 6
    %v594 = vperm.slane %v56, 0
    %v595 = vperm.slane %v588, 0
    %v596 = vperm.slane %v589, 0
    %v597 = vperm.slane %v590, 0
    %v598 = vperm.slane %v591, 0
    %v599 = vperm.slane %v592, 0
    %v600 = vperm.slane %v593, 0
    %v601 = vperm.slane %v59, 0
    %vm610 = vcmp.lt.f32.partialorder %v580, %v594
    %vm611 = vcmp.lt.f32.partialorder %v581, %v594
    %vm612 = vcmp.lt.f32.partialorder %v582, %v594
    %vm613 = vcmp.lt.f32.partialorder %v583, %v594
    %vm614 = vcmp.lt.f32.partialorder %v584, %v594
    %vm615 = vcmp.lt.f32.partialorder %v585, %v594
    %vm616 = vcmp.lt.f32.partialorder %v586, %v594
    %vm617 = vcmp.lt.f32.partialorder %v587, %v594
    %vm618 = vcmp.lt.f32.partialorder %v580, %v595
    %vm619 = vcmp.lt.f32.partialorder %v581, %v595
    %vm620 = vcmp.lt.f32.partialorder %v582, %v595
    %vm621 = vcmp.lt.f32.partialorder %v583, %v595
    %vm622 = vcmp.lt.f32.partialorder %v584, %v595
    %vm623 = vcmp.lt.f32.partialorder %v585, %v595
    %vm624 = vcmp.lt.f32.partialorder %v586, %v595
    %vm625 = vcmp.lt.f32.partialorder %v587, %v595
    %vm626 = vcmp.lt.f32.partialorder %v580, %v596
    %vm627 = vcmp.lt.f32.partialorder %v581, %v596
    %vm628 = vcmp.lt.f32.partialorder %v582, %v596
    %vm629 = vcmp.lt.f32.partialorder %v583, %v596
    %vm630 = vcmp.lt.f32.partialorder %v584, %v596
    %vm631 = vcmp.lt.f32.partialorder %v585, %v596
    %vm632 = vcmp.lt.f32.partialorder %v586, %v596
    %vm633 = vcmp.lt.f32.partialorder %v587, %v596
    %vm634 = vcmp.lt.f32.partialorder %v580, %v597
    %vm635 = vcmp.lt.f32.partialorder %v581, %v597
    %vm636 = vcmp.lt.f32.partialorder %v582, %v597
    %vm637 = vcmp.lt.f32.partialorder %v583, %v597
    %vm638 = vcmp.lt.f32.partialorder %v584, %v597
    %vm639 = vcmp.lt.f32.partialorder %v585, %v597
    %vm640 = vcmp.lt.f32.partialorder %v586, %v597
    %vm641 = vcmp.lt.f32.partialorder %v587, %v597
    %vm642 = vcmp.lt.f32.partialorder %v580, %v598
    %vm643 = vcmp.lt.f32.partialorder %v581, %v598
    %vm644 = vcmp.lt.f32.partialorder %v582, %v598
    %vm645 = vcmp.lt.f32.partialorder %v583, %v598
    %vm646 = vcmp.lt.f32.partialorder %v584, %v598
    %vm647 = vcmp.lt.f32.partialorder %v585, %v598
    %vm648 = vcmp.lt.f32.partialorder %v586, %v598
    %vm649 = vcmp.lt.f32.partialorder %v587, %v598
    %vm650 = vcmp.lt.f32.partialorder %v580, %v599
    %vm651 = vcmp.lt.f32.partialorder %v581, %v599
    %vm652 = vcmp.lt.f32.partialorder %v582, %v599
    %vm653 = vcmp.lt.f32.partialorder %v583, %v599
    %vm654 = vcmp.lt.f32.partialorder %v584, %v599
    %vm655 = vcmp.lt.f32.partialorder %v585, %v599
    %vm656 = vcmp.lt.f32.partialorder %v586, %v599
    %vm657 = vcmp.lt.f32.partialorder %v587, %v599
    %vm658 = vcmp.lt.f32.partialorder %v580, %v600
    %vm659 = vcmp.lt.f32.partialorder %v581, %v600
    %vm660 = vcmp.lt.f32.partialorder %v582, %v600
    %vm661 = vcmp.lt.f32.partialorder %v583, %v600
    %vm662 = vcmp.lt.f32.partialorder %v584, %v600
    %vm663 = vcmp.lt.f32.partialorder %v585, %v600
    %vm664 = vcmp.lt.f32.partialorder %v586, %v600
    %vm665 = vcmp.lt.f32.partialorder %v587, %v600
    %vm666 = vcmp.lt.f32.partialorder %v580, %v601
    %vm667 = vcmp.lt.f32.partialorder %v581, %v601
    %vm668 = vcmp.lt.f32.partialorder %v582, %v601
    %vm669 = vcmp.lt.f32.partialorder %v583, %v601
    %vm670 = vcmp.lt.f32.partialorder %v584, %v601
    %vm671 = vcmp.lt.f32.partialorder %v585, %v601
    %vm672 = vcmp.lt.f32.partialorder %v586, %v601
    %vm673 = vcmp.lt.f32.partialorder %v587, %v601
    %v674 = vsel %vm610, 1, 0
    %v675 = vsel %vm611, 1, 0
    %v676 = vsel %vm612, 1, 0
    %v677 = vsel %vm613, 1, 0
    %v678 = vsel %vm614, 1, 0
    %v679 = vsel %vm615, 1, 0
    %v680 = vsel %vm616, 1, 0
    %v681 = vsel %vm617, 1, 0
    %v682 = vsel %vm618, 1, 0
    %v683 = vsel %vm619, 1, 0
    %v684 = vsel %vm620, 1, 0
    %v685 = vsel %vm621, 1, 0
    %v686 = vsel %vm622, 1, 0
    %v687 = vsel %vm623, 1, 0
    %v688 = vsel %vm624, 1, 0
    %v689 = vsel %vm625, 1, 0
    %v690 = vsel %vm626, 1, 0
    %v691 = vsel %vm627, 1, 0
    %v692 = vsel %vm628, 1, 0
    %v693 = vsel %vm629, 1, 0
    %v694 = vsel %vm630, 1, 0
    %v695 = vsel %vm631, 1, 0
    %v696 = vsel %vm632, 1, 0
    %v697 = vsel %vm633, 1, 0
    %v698 = vsel %vm634, 1, 0
    %v699 = vsel %vm635, 1, 0
    %v700 = vsel %vm636, 1, 0
    %v701 = vsel %vm637, 1, 0
    %v702 = vsel %vm638, 1, 0
    %v703 = vsel %vm639, 1, 0
    %v704 = vsel %vm640, 1, 0
    %v705 = vsel %vm641, 1, 0
    %v706 = vsel %vm642, 1, 0
    %v707 = vsel %vm643, 1, 0
    %v708 = vsel %vm644, 1, 0
    %v709 = vsel %vm645, 1, 0
    %v710 = vsel %vm646, 1, 0
    %v711 = vsel %vm647, 1, 0
    %v712 = vsel %vm648, 1, 0
    %v713 = vsel %vm649, 1, 0
    %v714 = vsel %vm650, 1, 0
    %v715 = vsel %vm651, 1, 0
    %v716 = vsel %vm652, 1, 0
    %v717 = vsel %vm653, 1, 0
    %v718 = vsel %vm654, 1, 0
    %v719 = vsel %vm655, 1, 0
    %v720 = vsel %vm656, 1, 0
    %v721 = vsel %vm657, 1, 0
    %v722 = vsel %vm658, 1, 0
    %v723 = vsel %vm659, 1, 0
    %v724 = vsel %vm660, 1, 0
    %v725 = vsel %vm661, 1, 0
    %v726 = vsel %vm662, 1, 0
    %v727 = vsel %vm663, 1, 0
    %v728 = vsel %vm664, 1, 0
    %v729 = vsel %vm665, 1, 0
    %v730 = vsel %vm666, 1, 0
    %v731 = vsel %vm667, 1, 0
    %v732 = vsel %vm668, 1, 0
    %v733 = vsel %vm669, 1, 0
    %v734 = vsel %vm670, 1, 0
    %v735 = vsel %vm671, 1, 0
    %v736 = vsel %vm672, 1, 0
    %v737 = vsel %vm673, 1, 0
    %v738 = vsel %vm122, %v674, 0
    %v739 = vsel %vm122, %v675, 0
    %v740 = vadd.s32 %v738, %v739
    %v741 = vsel %vm122, %v676, 0
    %v742 = vadd.s32 %v740, %v741
    %v743 = vsel %vm122, %v677, 0
    %v744 = vadd.s32 %v742, %v743
    %v745 = vsel %vm122, %v678, 0
    %v746 = vadd.s32 %v744, %v745
    %v747 = vsel %vm122, %v679, 0
    %v748 = vadd.s32 %v746, %v747
    %v749 = vsel %vm122, %v680, 0
    %v750 = vadd.s32 %v748, %v749
    %v751 = vsel %vm122, %v681, 0
    %v752 = vadd.s32 %v750, %v751
    %v753 = vsel %vm122, %v682, 0
    %v754 = vsel %vm122, %v683, 0
    %v755 = vadd.s32 %v753, %v754
    %v756 = vsel %vm122, %v684, 0
    %v757 = vadd.s32 %v755, %v756
    %v758 = vsel %vm122, %v685, 0
    %v759 = vadd.s32 %v757, %v758
    %v760 = vsel %vm122, %v686, 0
    %v761 = vadd.s32 %v759, %v760
    %v762 = vsel %vm122, %v687, 0
    %v763 = vadd.s32 %v761, %v762
    %v764 = vsel %vm122, %v688, 0
    %v765 = vadd.s32 %v763, %v764
    %v766 = vsel %vm122, %v689, 0
    %v767 = vadd.s32 %v765, %v766
    %v768 = vsel %vm122, %v690, 0
    %v769 = vsel %vm122, %v691, 0
    %v770 = vadd.s32 %v768, %v769
    %v771 = vsel %vm122, %v692, 0
    %v772 = vadd.s32 %v770, %v771
    %v773 = vsel %vm122, %v693, 0
    %v774 = vadd.s32 %v772, %v773
    %v775 = vsel %vm122, %v694, 0
    %v776 = vadd.s32 %v774, %v775
    %v777 = vsel %vm122, %v695, 0
    %v778 = vadd.s32 %v776, %v777
    %v779 = vsel %vm122, %v696, 0
    %v780 = vadd.s32 %v778, %v779
    %v781 = vsel %vm122, %v697, 0
    %v782 = vadd.s32 %v780, %v781
    %v783 = vsel %vm122, %v698, 0
    %v784 = vsel %vm122, %v699, 0
    %v785 = vadd.s32 %v783, %v784
    %v786 = vsel %vm122, %v700, 0
    %v787 = vadd.s32 %v785, %v786
    %v788 = vsel %vm122, %v701, 0
    %v789 = vadd.s32 %v787, %v788
    %v790 = vsel %vm122, %v702, 0
    %v791 = vadd.s32 %v789, %v790
    %v792 = vsel %vm122, %v703, 0
    %v793 = vadd.s32 %v791, %v792
    %v794 = vsel %vm122, %v704, 0
    %v795 = vadd.s32 %v793, %v794
    %v796 = vsel %vm122, %v705, 0
    %v797 = vadd.s32 %v795, %v796
    %v798 = vsel %vm122, %v706, 0
    %v799 = vsel %vm122, %v707, 0
    %v800 = vadd.s32 %v798, %v799
    %v801 = vsel %vm122, %v708, 0
    %v802 = vadd.s32 %v800, %v801
    %v803 = vsel %vm122, %v709, 0
    %v804 = vadd.s32 %v802, %v803
    %v805 = vsel %vm122, %v710, 0
    %v806 = vadd.s32 %v804, %v805
    %v807 = vsel %vm122, %v711, 0
    %v808 = vadd.s32 %v806, %v807
    %v809 = vsel %vm122, %v712, 0
    %v810 = vadd.s32 %v808, %v809
    %v811 = vsel %vm122, %v713, 0
    %v812 = vadd.s32 %v810, %v811
    %v813 = vsel %vm122, %v714, 0
    %v814 = vsel %vm122, %v715, 0
    %v815 = vadd.s32 %v813, %v814
    %v816 = vsel %vm122, %v716, 0
    %v817 = vadd.s32 %v815, %v816
    %v818 = vsel %vm122, %v717, 0
    %v819 = vadd.s32 %v817, %v818
    %v820 = vsel %vm122, %v718, 0
    %v821 = vadd.s32 %v819, %v820
    %v822 = vsel %vm122, %v719, 0
    %v823 = vadd.s32 %v821, %v822
    %v824 = vsel %vm122, %v720, 0
    %v825 = vadd.s32 %v823, %v824
    %v826 = vsel %vm122, %v721, 0
    %v827 = vadd.s32 %v825, %v826
    %v828 = vsel %vm122, %v722, 0
    %v829 = vsel %vm122, %v723, 0
    %v830 = vadd.s32 %v828, %v829
    %v831 = vsel %vm122, %v724, 0
    %v832 = vadd.s32 %v830, %v831
    %v833 = vsel %vm122, %v725, 0
    %v834 = vadd.s32 %v832, %v833
    %v835 = vsel %vm122, %v726, 0
    %v836 = vadd.s32 %v834, %v835
    %v837 = vsel %vm122, %v727, 0
    %v838 = vadd.s32 %v836, %v837
    %v839 = vsel %vm122, %v728, 0
    %v840 = vadd.s32 %v838, %v839
    %v841 = vsel %vm122, %v729, 0
    %v842 = vadd.s32 %v840, %v841
    %v843 = vsel %vm122, %v730, 0
    %v844 = vsel %vm122, %v731, 0
    %v845 = vadd.s32 %v843, %v844
    %v846 = vsel %vm122, %v732, 0
    %v847 = vadd.s32 %v845, %v846
    %v848 = vsel %vm122, %v733, 0
    %v849 = vadd.s32 %v847, %v848
    %v850 = vsel %vm122, %v734, 0
    %v851 = vadd.s32 %v849, %v850
    %v852 = vsel %vm122, %v735, 0
    %v853 = vadd.s32 %v851, %v852
    %v854 = vsel %vm122, %v736, 0
    %v855 = vadd.s32 %v853, %v854
    %v856 = vsel %vm122, %v737, 0
    %v857 = vadd.s32 %v855, %v856
    %v858 = vrot.slane %v767, 7
    %v859 = vsel %vm478, %v858, %v752
    %v860 = vrot.slane %v782, 6
    %v861 = vsel %vm480, %v860, %v859
    %v862 = vrot.slane %v797, 5
    %v863 = vsel %vm482, %v862, %v861
    %v864 = vrot.slane %v812, 4
    %v865 = vsel %vm484, %v864, %v863
    %v866 = vrot.slane %v827, 3
    %v867 = vsel %vm486, %v866, %v865
    %v868 = vrot.slane %v842, 2
    %v869 = vsel %vm488, %v868, %v867
    %v870 = vrot.slane %v857, 1
    %v871 = vsel %vm490, %v870, %v869
    %v872 = vadd.s32 %v125, %v871
    %v873 = vperm.slane %v580, 0
    %v874 = vperm.slane %v581, 0
    %v875 = vperm.slane %v582, 0
    %v876 = vperm.slane %v583, 0
    %v877 = vperm.slane %v584, 0
    %v878 = vperm.slane %v585, 0
    %v879 = vperm.slane %v586, 0
    %v880 = vperm.slane %v587, 0
    %vm881 = vcmp.le.f32.partialorder %v56, %v873
    %vm882 = vcmp.le.f32.partialorder %v56, %v874
    %vm883 = vcmp.le.f32.partialorder %v56, %v875
    %vm884 = vcmp.le.f32.partialorder %v56, %v876
    %vm885 = vcmp.le.f32.partialorder %v56, %v877
    %vm886 = vcmp.le.f32.partialorder %v56, %v878
    %vm887 = vcmp.le.f32.partialorder %v56, %v879
    %vm888 = vcmp.le.f32.partialorder %v56, %v880
    %v889 = vsel %vm881, 1, 0
    %v890 = vsel %vm882, 1, 0
    %v891 = vsel %vm883, 1, 0
    %v892 = vsel %vm884, 1, 0
    %v893 = vsel %vm885, 1, 0
    %v894 = vsel %vm886, 1, 0
    %v895 = vsel %vm887, 1, 0
    %v896 = vsel %vm888, 1, 0
    %v897 = vrot.slane %v889, 4
    %v898 = vadd.s32 %v889, %v897
    %v899 = vrot.slane %v898, 2
    %v900 = vadd.s32 %v898, %v899
    %v901 = vrot.slane %v900, 1
    %v902 = vadd.s32 %v900, %v901
    %v903 = vrot.slane %v890, 4
    %v904 = vadd.s32 %v890, %v903
    %v905 = vrot.slane %v904, 2
    %v906 = vadd.s32 %v904, %v905
    %v907 = vrot.slane %v906, 1
    %v908 = vadd.s32 %v906, %v907
    %v909 = vrot.slane %v891, 4
    %v910 = vadd.s32 %v891, %v909
    %v911 = vrot.slane %v910, 2
    %v912 = vadd.s32 %v910, %v911
    %v913 = vrot.slane %v912, 1
    %v914 = vadd.s32 %v912, %v913
    %v915 = vrot.slane %v892, 4
    %v916 = vadd.s32 %v892, %v915
    %v917 = vrot.slane %v916, 2
    %v918 = vadd.s32 %v916, %v917
    %v919 = vrot.slane %v918, 1
    %v920 = vadd.s32 %v918, %v919
    %v921 = vrot.slane %v893, 4
    %v922 = vadd.s32 %v893, %v921
    %v923 = vrot.slane %v922, 2
    %v924 = vadd.s32 %v922, %v923
    %v925 = vrot.slane %v924, 1
    %v926 = vadd.s32 %v924, %v925
    %v927 = vrot.slane %v894, 4
    %v928 = vadd.s32 %v894, %v927
    %v929 = vrot.slane %v928, 2
    %v930 = vadd.s32 %v928, %v929
    %v931 = vrot.slane %v930, 1
    %v932 = vadd.s32 %v930, %v931
    %v933 = vrot.slane %v895, 4
    %v934 = vadd.s32 %v895, %v933
    %v935 = vrot.slane %v934, 2
    %v936 = vadd.s32 %v934, %v935
    %v937 = vrot.slane %v936, 1
    %v938 = vadd.s32 %v936, %v937
    %v939 = vrot.slane %v896, 4
    %v940 = vadd.s32 %v896, %v939
    %v941 = vrot.slane %v940, 2
    %v942 = vadd.s32 %v940, %v941
    %v943 = vrot.slane %v942, 1
    %v944 = vadd.s32 %v942, %v943
    %v945 = vsel %vm478, %v908, %v902
    %v946 = vsel %vm480, %v914, %v945
    %v947 = vsel %vm482, %v920, %v946
    %v948 = vsel %vm484, %v926, %v947
    %v949 = vsel %vm486, %v932, %v948
    %v950 = vsel %vm488, %v938, %v949
    %v951 = vsel %vm490, %v944, %v950
    %v952 = vadd.s32 %v125, %v951
    %v953 = vadd.s32 %v125, 8
    %v954 = vrot.slane %v872, 1
    %v955 = vrot.slane %v872, 2
    %v956 = vrot.slane %v872, 3
    %v957 = vrot.slane %v872, 4
    %v958 = vrot.slane %v872, 5
    %v959 = vrot.slane %v872, 6
    %v960 = vrot.slane %v872, 7
    %v961 = vperm.slane %v872, 0
    %v962 = vperm.slane %v954, 0
    %v963 = vperm.slane %v955, 0
    %v964 = vperm.slane %v956, 0
    %v965 = vperm.slane %v957, 0
    %v966 = vperm.slane %v958, 0
    %v967 = vperm.slane %v959, 0
    %v968 = vperm.slane %v960, 0
    %vm969 = vcmp.eq.s32.totalorder %v961, %v125
    %vm970 = vcmp.eq.s32.totalorder %v961, %v953
    %vm971 = vcmp.eq.s32.totalorder %v962, %v125
    %vm972 = vcmp.eq.s32.totalorder %v962, %v953
    %vm973 = vcmp.eq.s32.totalorder %v963, %v125
    %vm974 = vcmp.eq.s32.totalorder %v963, %v953
    %vm975 = vcmp.eq.s32.totalorder %v964, %v125
    %vm976 = vcmp.eq.s32.totalorder %v964, %v953
    %vm977 = vcmp.eq.s32.totalorder %v965, %v125
    %vm978 = vcmp.eq.s32.totalorder %v965, %v953
    %vm979 = vcmp.eq.s32.totalorder %v966, %v125
    %vm980 = vcmp.eq.s32.totalorder %v966, %v953
    %vm981 = vcmp.eq.s32.totalorder %v967, %v125
    %vm982 = vcmp.eq.s32.totalorder %v967, %v953
    %vm983 = vcmp.eq.s32.totalorder %v968, %v125
    %vm984 = vcmp.eq.s32.totalorder %v968, %v953
    %v985 = vsel %vm969, %v594, 0.0
    %v986 = vsel %vm970, %v594, 0.0
    %v987 = vsel %vm971, %v595, 0.0
    %v988 = vsel %vm972, %v595, 0.0
    %v989 = vsel %vm973, %v596, 0.0
    %v990 = vsel %vm974, %v596, 0.0
    %v991 = vsel %vm975, %v597, 0.0
    %v992 = vsel %vm976, %v597, 0.0
    %v993 = vsel %vm977, %v598, 0.0
    %v994 = vsel %vm978, %v598, 0.0
    %v995 = vsel %vm979, %v599, 0.0
    %v996 = vsel %vm980, %v599, 0.0
    %v997 = vsel %vm981, %v600, 0.0
    %v998 = vsel %vm982, %v600, 0.0
    %v999 = vsel %vm983, %v601, 0.0
    %v1000 = vsel %vm984, %v601, 0.0
    %v1001 = vadd.f32 %v985, %v987
    %v1002 = vadd.f32 %v1001, %v989
    %v1003 = vadd.f32 %v1002, %v991
    %v1004 = vadd.f32 %v1003, %v993
    %v1005 = vadd.f32 %v1004, %v995
    %v1006 = vadd.f32 %v1005, %v997
    %v1007 = vadd.f32 %v1006, %v999
    %v1008 = vadd.f32 %v986, %v988
    %v1009 = vadd.f32 %v1008, %v990
    %v1010 = vadd.f32 %v1009, %v992
    %v1011 = vadd.f32 %v1010, %v994
    %v1012 = vadd.f32 %v1011, %v996
    %v1013 = vadd.f32 %v1012, %v998
    %v1014 = vadd.f32 %v1013, %v1000
    %v1015 = vrot.slane %v952, 1
    %v1016 = vrot.slane %v952, 2
    %v1017 = vrot.slane %v952, 3
    %v1018 = vrot.slane %v952, 4
    %v1019 = vrot.slane %v952, 5
    %v1020 = vrot.slane %v952, 6
    %v1021 = vrot.slane %v952, 7
    %v1022 = vperm.slane %v952, 0
    %v1023 = vperm.slane %v1015, 0
    %v1024 = vperm.slane %v1016, 0
    %v1025 = vperm.slane %v1017, 0
    %v1026 = vperm.slane %v1018, 0
    %v1027 = vperm.slane %v1019, 0
    %v1028 = vperm.slane %v1020, 0
    %v1029 = vperm.slane %v1021, 0
    %vm1030 = vcmp.eq.s32.totalorder %v1022, %v125
    %vm1031 = vcmp.eq.s32.totalorder %v1022, %v953
    %vm1032 = vcmp.eq.s32.totalorder %v1023, %v125
    %vm1033 = vcmp.eq.s32.totalorder %v1023, %v953
    %vm1034 = vcmp.eq.s32.totalorder %v1024, %v125
    %vm1035 = vcmp.eq.s32.totalorder %v1024, %v953
    %vm1036 = vcmp.eq.s32.totalorder %v1025, %v125
    %vm1037 = vcmp.eq.s32.totalorder %v1025, %v953
    %vm1038 = vcmp.eq.s32.totalorder %v1026, %v125
    %vm1039 = vcmp.eq.s32.totalorder %v1026, %v953
    %vm1040 = vcmp.eq.s32.totalorder %v1027, %v125
    %vm1041 = vcmp.eq.s32.totalorder %v1027, %v953
    %vm1042 = vcmp.eq.s32.totalorder %v1028, %v125
    %vm1043 = vcmp.eq.s32.totalorder %v1028, %v953
    %vm1044 = vcmp.eq.s32.totalorder %v1029, %v125
    %vm1045 = vcmp.eq.s32.totalorder %v1029, %v953
    %v1046 = vsel %vm1030, %v873, 0.0
    %v1047 = vsel %vm1031, %v873, 0.0
    %v1048 = vsel %vm1032, %v874, 0.0
    %v1049 = vsel %vm1033, %v874, 0.0
    %v1050 = vsel %vm1034, %v875, 0.0
    %v1051 = vsel %vm1035, %v875, 0.0
    %v1052 = vsel %vm1036, %v876, 0.0
    %v1053 = vsel %vm1037, %v876, 0.0
    %v1054 = vsel %vm1038, %v877, 0.0
    %v1055 = vsel %vm1039, %v877, 0.0
    %v1056 = vsel %vm1040, %v878, 0.0
    %v1057 = vsel %vm1041, %v878, 0.0
    %v1058 = vsel %vm1042, %v879, 0.0
    %v1059 = vsel %vm1043, %v879, 0.0
    %v1060 = vsel %vm1044, %v880, 0.0
    %v1061 = vsel %vm1045, %v880, 0.0
    %v1062 = vadd.f32 %v1046, %v1048
    %v1063 = vadd.f32 %v1062, %v1050
    %v1064 = vadd.f32 %v1063, %v1052
    %v1065 = vadd.f32 %v1064, %v1054
    %v1066 = vadd.f32 %v1065, %v1056
    %v1067 = vadd.f32 %v1066, %v1058
    %v1068 = vadd.f32 %v1067, %v1060
    %v1069 = vadd.f32 %v1047, %v1049
    %v1070 = vadd.f32 %v1069, %v1051
    %v1071 = vadd.f32 %v1070, %v1053
    %v1072 = vadd.f32 %v1071, %v1055
    %v1073 = vadd.f32 %v1072, %v1057
    %v1074 = vadd.f32 %v1073, %v1059
    %v1075 = vadd.f32 %v1074, %v1061
    %v1076 = vadd.f32 %v1007, %v1068
    %v1077 = vadd.f32 %v1014, %v1075
    %1078 = vst [vmem:[#allocation8] sm:$0xff] %v1076
    %1079 = vst [vmem:[#allocation8 + $0x8] sm:$0xff] %v1077
    // Predicated region
    $region26: #{tpu_custom_call.1} parent=1 // pred_check
      _
    $region27: #{tpu_custom_call.1} parent=1 // pred_check_branch
      %1081 = sbr.rel (0) target = $region29
    $region28: #{tpu_custom_call.1} parent=1 // pred_region
      %1083 = vsyncadd [#allocation4], 0
      %s1084 = sshll.u32 [#allocation8], 4
      %s1085 = int_to_ptr.vmem [resolvable:$true] %s1084
      %s1086 = sshll.u32 %s3, 4
      %s1087 = int_to_ptr.hbm [resolvable:$true] %s1086
      %1092 = dma.vmem_to_hbm [thread:$0]  %s1085, 256, %s1087, [#allocation4], 128, 128, 8
    $region29: #{tpu_custom_call.1} parent=1 // pred_fallthru
      _
    // Predicated region
    $region30: #{tpu_custom_call.1} parent=1 // pred_check
      _
    $region31: #{tpu_custom_call.1} parent=1 // pred_check_branch
      %1094 = sbr.rel (0) target = $region33
    $region32: #{tpu_custom_call.1} parent=1 // pred_region
      %1096 = dma.done [#allocation4], 256
    $region33: #{tpu_custom_call.1} parent=1 // pred_fallthru
      _
    %1097 = vsyncpa [#allocation3], 1
    %1098 = vsyncpa [#allocation6], 1
    %1099 = vsyncpa [#allocation4], 1

</llo_original>
